<compile_context>
chip_gen: v7x
topology: tpu7x:2x2x1
jax: 0.10.0
libtpu: 0.0.40
codegen_flags: <defaults>
</compile_context>

<pallas_src>
import functools

import jax
import jax.numpy as jnp
from jax import lax
from jax.experimental import pallas as pl
from jax.experimental.pallas import tpu as pltpu


def _make_conv_kernel(KH, KW, stride, Cin, Cout, OH, Wf, OL):
    """Per-batch-element conv kernel; all shape params are static Python ints."""

    def kernel(x_ref, w_ref, b_ref, o_ref, a_ref):
        # x_ref: (1, stride*stride, Cin, Hf*Wf)  phase-folded padded image
        # w_ref: (Cout, KH*KW*Cin)               packed weights (tap-major)
        # b_ref: (Cout, 1)
        # o_ref: (1, Cout, OH*Wf)                output, rows padded to Wf lanes
        # a_ref: (KH*KW*Cin, OH*Wf)              VMEM im2col scratch
        row = 0
        for kh in range(KH):
            ph, qh = kh % stride, kh // stride
            for kw in range(KW):
                pw, qw = kw % stride, kw // stride
                p = ph * stride + pw          # phase slab index
                start = qh * Wf + qw          # contiguous static lane slice
                a_ref[row:row + Cin, :] = x_ref[0, p, :, start:start + OL]
                row += Cin
        # single deep contraction: K = KH*KW*Cin, spatial on lanes
        acc = jnp.dot(w_ref[...], a_ref[...],
                      preferred_element_type=jnp.float32)
        o_ref[0] = (acc + b_ref[...]).astype(o_ref.dtype)

    return kernel


@functools.partial(jax.jit, static_argnames=("stride",))
def conv_block_forward(x, weight, bias, *, stride):
    """x: (N, Cin, H, W) NCHW; weight: (Cout, Cin, KH, KW); bias: (Cout,)."""
    N, Cin, H, W = x.shape
    Cout, _, KH, KW = weight.shape
    s = stride
    pad_h, pad_w = KH // 2, KW // 2

    # ---- reflection pad (stay in NCHW; no transposes of the activation) ----
    xp = jnp.pad(x, ((0, 0), (0, 0), (pad_h, pad_h), (pad_w, pad_w)),
                 mode="reflect")
    Hp, Wp = xp.shape[2], xp.shape[3]
    OH = (Hp - KH) // s + 1
    OW = (Wp - KW) // s + 1
    qh_max, qw_max = (KH - 1) // s, (KW - 1) // s

    # ---- fold BOTH stride phases (H and W) so in-kernel taps are static
    # contiguous slices.  Align so every slice stays in bounds; the alignment
    # zeros are never read by valid output columns. ----
    Wf = max(-(-Wp // s), OW + qw_max)
    Hf = max(-(-Hp // s), OH + qh_max + (1 if qw_max > 0 else 0))
    Hs, Ws = Hf * s, Wf * s
    xp = jnp.pad(xp, ((0, 0), (0, 0), (0, Hs - Hp), (0, Ws - Wp)))
    # (N,Cin,Hs,Ws) -> (N,Cin,Hf,s,Wf,s) -> (N,ph,pw,Cin,Hf,Wf) -> flatten
    xf = xp.reshape(N, Cin, Hf, s, Wf, s).transpose(0, 3, 5, 1, 2, 4)
    XL = Hf * Wf
    xf = xf.reshape(N, s * s, Cin, XL)

    # ---- pack weights tap-major: column (kh, kw, ci) = weight[:, ci, kh, kw]
    # (matches the a_ref row order in the kernel). bias -> (Cout, 1). ----
    Ktot = KH * KW * Cin
    w_packed = jnp.transpose(weight, (0, 2, 3, 1)).reshape(Cout, Ktot)
    b2 = bias.reshape(Cout, 1)

    OL = OH * Wf
    kernel = _make_conv_kernel(KH, KW, s, Cin, Cout, OH, Wf, OL)

    out = pl.pallas_call(
        kernel,
        out_shape=jax.ShapeDtypeStruct((N, Cout, OL), x.dtype),
        grid=(N,),
        in_specs=[
            # whole phase-folded image per batch element: read from HBM once.
            pl.BlockSpec((1, s * s, Cin, XL), lambda n: (n, 0, 0, 0)),
            # constant-index weights / bias: fetched once, VMEM resident.
            pl.BlockSpec((Cout, Ktot), lambda n: (0, 0)),
            pl.BlockSpec((Cout, 1), lambda n: (0, 0)),
        ],
        out_specs=pl.BlockSpec((1, Cout, OL), lambda n: (n, 0, 0)),
        scratch_shapes=[pltpu.VMEM((Ktot, OL), x.dtype)],
        compiler_params=pltpu.CompilerParams(
            dimension_semantics=("parallel",)),
    )(xf, w_packed, b2)

    # rows are Wf-padded on lanes: free reshape + tiny slice -> (N,Cout,OH,OW)
    return out.reshape(N, Cout, OH, Wf)[:, :, :, :OW]


def _reference(x, weight, bias, stride):
    """Pure-JAX reference of the PyTorch forward for verification."""
    pad_h, pad_w = weight.shape[2] // 2, weight.shape[3] // 2
    xp = jnp.pad(x, ((0, 0), (0, 0), (pad_h, pad_h), (pad_w, pad_w)),
                 mode="reflect")
    y = lax.conv_general_dilated(
        xp, weight,
        window_strides=(stride, stride),
        padding="VALID",
        dimension_numbers=("NCHW", "OIHW", "NCHW"),
    )
    return y + bias.reshape(1, -1, 1, 1)


if __name__ == "__main__":
    # ConvBlock(in_channels=4, out_channels=8, kernel_size=3, stride=2)
    in_channels, out_channels, kernel_size, stride = 4, 8, 3, 2
    N, H, W = 2, 16, 16

    key = jax.random.PRNGKey(0)
    kx, kwt, kb = jax.random.split(key, 3)

    x = jax.random.normal(kx, (N, in_channels, H, W), dtype=jnp.float32)

    fan_in = in_channels * kernel_size * kernel_size
    bound = 1.0 / (fan_in ** 0.5)  # PyTorch Conv2d default init bound
    weight = jax.random.uniform(
        kwt, (out_channels, in_channels, kernel_size, kernel_size),
        minval=-bound, maxval=bound, dtype=jnp.float32)
    bias = jax.random.uniform(
        kb, (out_channels,), minval=-bound, maxval=bound, dtype=jnp.float32)

    y = conv_block_forward(x, weight, bias, stride=stride)
    y = jax.block_until_ready(y)

    y_ref = _reference(x, weight, bias, stride)
    assert y.shape == y_ref.shape, (y.shape, y_ref.shape)
    err = float(jnp.max(jnp.abs(y - y_ref)))
    assert err < 1e-4, err

    print("KERNEL_OK")
</pallas_src>

<mosaic_0001>
module attributes {stable_mosaic.version = 11 : i64} {
  func.func @kernel(%arg0: i32, %arg1: memref<1x4x4x90xf32, #tpu.memory_space<vmem>>, %arg2: memref<8x36xf32, #tpu.memory_space<vmem>>, %arg3: memref<8x1xf32, #tpu.memory_space<vmem>>, %arg4: memref<1x8x72xf32, #tpu.memory_space<vmem>>, %arg5: memref<36x72xf32, #tpu.memory_space<vmem>>) attributes {dimension_semantics = [#tpu.dimension_semantics<parallel>], iteration_bounds = array<i64: 2>, scalar_prefetch = 0 : i64, scratch_operands = 1 : i64, tpu.core_type = #tpu.core_type<tc>, window_params = [{transform_indices = @transform_0, window_bounds = array<i64: 1, 4, 4, 90>}, {pipeline_mode = #tpu.pipeline_mode<synchronous>, transform_indices = @transform_1, window_bounds = array<i64: 8, 36>}, {pipeline_mode = #tpu.pipeline_mode<synchronous>, transform_indices = @transform_2, window_bounds = array<i64: 8, 1>}, {transform_indices = @transform_3, window_bounds = array<i64: 1, 8, 72>}]} {
    %c0 = arith.constant 0 : index
    %c0_0 = arith.constant 0 : index
    %c0_1 = arith.constant 0 : index
    %c0_2 = arith.constant 0 : index
    %0 = vector.load %arg1[%c0, %c0_0, %c0_1, %c0_2] : memref<1x4x4x90xf32, #tpu.memory_space<vmem>>, vector<1x1x4x72xf32>
    %1 = vector.shape_cast %0 : vector<1x1x4x72xf32> to vector<4x72xf32>
    %c0_3 = arith.constant 0 : index
    %c0_4 = arith.constant 0 : index
    %2 = vector.load %arg5[%c0_3, %c0_4] : memref<36x72xf32, #tpu.memory_space<vmem>>, vector<4x72xf32>
    tpu.vector_store %arg5[%c0_3, %c0_4], %1 {strides = array<i32>} : memref<36x72xf32, #tpu.memory_space<vmem>>, vector<4x72xf32>,
    %c0_5 = arith.constant 0 : index
    %c1 = arith.constant 1 : index
    %c0_6 = arith.constant 0 : index
    %c0_7 = arith.constant 0 : index
    %3 = vector.load %arg1[%c0_5, %c1, %c0_6, %c0_7] : memref<1x4x4x90xf32, #tpu.memory_space<vmem>>, vector<1x1x4x72xf32>
    %4 = vector.shape_cast %3 : vector<1x1x4x72xf32> to vector<4x72xf32>
    %c4 = arith.constant 4 : index
    %c0_8 = arith.constant 0 : index
    %5 = vector.load %arg5[%c4, %c0_8] : memref<36x72xf32, #tpu.memory_space<vmem>>, vector<4x72xf32>
    tpu.vector_store %arg5[%c4, %c0_8], %4 {strides = array<i32>} : memref<36x72xf32, #tpu.memory_space<vmem>>, vector<4x72xf32>,
    %c0_9 = arith.constant 0 : index
    %c0_10 = arith.constant 0 : index
    %c0_11 = arith.constant 0 : index
    %c1_12 = arith.constant 1 : index
    %6 = vector.load %arg1[%c0_9, %c0_10, %c0_11, %c1_12] : memref<1x4x4x90xf32, #tpu.memory_space<vmem>>, vector<1x1x4x72xf32>
    %7 = vector.shape_cast %6 : vector<1x1x4x72xf32> to vector<4x72xf32>
    %c8 = arith.constant 8 : index
    %c0_13 = arith.constant 0 : index
    %8 = vector.load %arg5[%c8, %c0_13] : memref<36x72xf32, #tpu.memory_space<vmem>>, vector<4x72xf32>
    tpu.vector_store %arg5[%c8, %c0_13], %7 {strides = array<i32>} : memref<36x72xf32, #tpu.memory_space<vmem>>, vector<4x72xf32>,
    %c0_14 = arith.constant 0 : index
    %c2 = arith.constant 2 : index
    %c0_15 = arith.constant 0 : index
    %c0_16 = arith.constant 0 : index
    %9 = vector.load %arg1[%c0_14, %c2, %c0_15, %c0_16] : memref<1x4x4x90xf32, #tpu.memory_space<vmem>>, vector<1x1x4x72xf32>
    %10 = vector.shape_cast %9 : vector<1x1x4x72xf32> to vector<4x72xf32>
    %c12 = arith.constant 12 : index
    %c0_17 = arith.constant 0 : index
    %11 = vector.load %arg5[%c12, %c0_17] : memref<36x72xf32, #tpu.memory_space<vmem>>, vector<4x72xf32>
    tpu.vector_store %arg5[%c12, %c0_17], %10 {strides = array<i32>} : memref<36x72xf32, #tpu.memory_space<vmem>>, vector<4x72xf32>,
    %c0_18 = arith.constant 0 : index
    %c3 = arith.constant 3 : index
    %c0_19 = arith.constant 0 : index
    %c0_20 = arith.constant 0 : index
    %12 = vector.load %arg1[%c0_18, %c3, %c0_19, %c0_20] : memref<1x4x4x90xf32, #tpu.memory_space<vmem>>, vector<1x1x4x72xf32>
    %13 = vector.shape_cast %12 : vector<1x1x4x72xf32> to vector<4x72xf32>
    %c16 = arith.constant 16 : index
    %c0_21 = arith.constant 0 : index
    %14 = vector.load %arg5[%c16, %c0_21] : memref<36x72xf32, #tpu.memory_space<vmem>>, vector<4x72xf32>
    tpu.vector_store %arg5[%c16, %c0_21], %13 {strides = array<i32>} : memref<36x72xf32, #tpu.memory_space<vmem>>, vector<4x72xf32>,
    %c0_22 = arith.constant 0 : index
    %c2_23 = arith.constant 2 : index
    %c0_24 = arith.constant 0 : index
    %c1_25 = arith.constant 1 : index
    %15 = vector.load %arg1[%c0_22, %c2_23, %c0_24, %c1_25] : memref<1x4x4x90xf32, #tpu.memory_space<vmem>>, vector<1x1x4x72xf32>
    %16 = vector.shape_cast %15 : vector<1x1x4x72xf32> to vector<4x72xf32>
    %c20 = arith.constant 20 : index
    %c0_26 = arith.constant 0 : index
    %17 = vector.load %arg5[%c20, %c0_26] : memref<36x72xf32, #tpu.memory_space<vmem>>, vector<4x72xf32>
    tpu.vector_store %arg5[%c20, %c0_26], %16 {strides = array<i32>} : memref<36x72xf32, #tpu.memory_space<vmem>>, vector<4x72xf32>,
    %c0_27 = arith.constant 0 : index
    %c0_28 = arith.constant 0 : index
    %c0_29 = arith.constant 0 : index
    %c9 = arith.constant 9 : index
    %18 = vector.load %arg1[%c0_27, %c0_28, %c0_29, %c9] : memref<1x4x4x90xf32, #tpu.memory_space<vmem>>, vector<1x1x4x72xf32>
    %19 = vector.shape_cast %18 : vector<1x1x4x72xf32> to vector<4x72xf32>
    %c24 = arith.constant 24 : index
    %c0_30 = arith.constant 0 : index
    %20 = vector.load %arg5[%c24, %c0_30] : memref<36x72xf32, #tpu.memory_space<vmem>>, vector<4x72xf32>
    tpu.vector_store %arg5[%c24, %c0_30], %19 {strides = array<i32>} : memref<36x72xf32, #tpu.memory_space<vmem>>, vector<4x72xf32>,
    %c0_31 = arith.constant 0 : index
    %c1_32 = arith.constant 1 : index
    %c0_33 = arith.constant 0 : index
    %c9_34 = arith.constant 9 : index
    %21 = vector.load %arg1[%c0_31, %c1_32, %c0_33, %c9_34] : memref<1x4x4x90xf32, #tpu.memory_space<vmem>>, vector<1x1x4x72xf32>
    %22 = vector.shape_cast %21 : vector<1x1x4x72xf32> to vector<4x72xf32>
    %c28 = arith.constant 28 : index
    %c0_35 = arith.constant 0 : index
    %23 = vector.load %arg5[%c28, %c0_35] : memref<36x72xf32, #tpu.memory_space<vmem>>, vector<4x72xf32>
    tpu.vector_store %arg5[%c28, %c0_35], %22 {strides = array<i32>} : memref<36x72xf32, #tpu.memory_space<vmem>>, vector<4x72xf32>,
    %c0_36 = arith.constant 0 : index
    %c0_37 = arith.constant 0 : index
    %c0_38 = arith.constant 0 : index
    %c10 = arith.constant 10 : index
    %24 = vector.load %arg1[%c0_36, %c0_37, %c0_38, %c10] : memref<1x4x4x90xf32, #tpu.memory_space<vmem>>, vector<1x1x4x72xf32>
    %25 = vector.shape_cast %24 : vector<1x1x4x72xf32> to vector<4x72xf32>
    %c32 = arith.constant 32 : index
    %c0_39 = arith.constant 0 : index
    %26 = vector.load %arg5[%c32, %c0_39] : memref<36x72xf32, #tpu.memory_space<vmem>>, vector<4x72xf32>
    tpu.vector_store %arg5[%c32, %c0_39], %25 {strides = array<i32>} : memref<36x72xf32, #tpu.memory_space<vmem>>, vector<4x72xf32>,
    %c0_40 = arith.constant 0 : index
    %c0_41 = arith.constant 0 : index
    %27 = vector.load %arg2[%c0_40, %c0_41] : memref<8x36xf32, #tpu.memory_space<vmem>>, vector<8x36xf32>
    %c0_42 = arith.constant 0 : index
    %c0_43 = arith.constant 0 : index
    %28 = vector.load %arg5[%c0_42, %c0_43] : memref<36x72xf32, #tpu.memory_space<vmem>>, vector<36x72xf32>
    %cst = arith.constant dense<0.000000e+00> : vector<8x72xf32>
    %29 = tpu.matmul %27, %28, %cst {dimension_numbers = #tpu.dot_dimension_numbers<[1], [0], [0], [1], [0, 0, 1, 1], [], []>} : vector<8x36xf32>, vector<36x72xf32>, vector<8x72xf32> -> vector<8x72xf32>
    %c0_44 = arith.constant 0 : index
    %c0_45 = arith.constant 0 : index
    %30 = vector.load %arg3[%c0_44, %c0_45] : memref<8x1xf32, #tpu.memory_space<vmem>>, vector<8x1xf32>
    %31 = vector.broadcast %30 : vector<8x1xf32> to vector<8x72xf32>
    %32 = arith.addf %29, %31 : vector<8x72xf32>
    %c0_46 = arith.constant 0 : index
    %c0_47 = arith.constant 0 : index
    %c0_48 = arith.constant 0 : index
    %33 = vector.load %arg4[%c0_46, %c0_47, %c0_48] : memref<1x8x72xf32, #tpu.memory_space<vmem>>, vector<1x8x72xf32>
    %34 = vector.shape_cast %33 : vector<1x8x72xf32> to vector<8x72xf32>
    %35 = vector.shape_cast %32 : vector<8x72xf32> to vector<1x8x72xf32>
    tpu.vector_store %arg4[%c0_46, %c0_47, %c0_48], %35 {strides = array<i32>} : memref<1x8x72xf32, #tpu.memory_space<vmem>>, vector<1x8x72xf32>,
    return
  }
  func.func @transform_0(%arg0: i32) -> (i32, i32, i32, i32) {
    %c0_i32 = arith.constant 0 : i32
    %c0_i32_0 = arith.constant 0 : i32
    %c0_i32_1 = arith.constant 0 : i32
    %c0_i32_2 = arith.constant 0 : i32
    return %arg0, %c0_i32, %c0_i32_0, %c0_i32_1 : i32, i32, i32, i32
  }
  func.func @transform_1(%arg0: i32) -> (i32, i32) {
    %c0_i32 = arith.constant 0 : i32
    %c0_i32_0 = arith.constant 0 : i32
    %c0_i32_1 = arith.constant 0 : i32
    return %c0_i32, %c0_i32_0 : i32, i32
  }
  func.func @transform_2(%arg0: i32) -> (i32, i32) {
    %c0_i32 = arith.constant 0 : i32
    %c0_i32_0 = arith.constant 0 : i32
    %c0_i32_1 = arith.constant 0 : i32
    return %c0_i32, %c0_i32_0 : i32, i32
  }
  func.func @transform_3(%arg0: i32) -> (i32, i32, i32) {
    %c0_i32 = arith.constant 0 : i32
    %c0_i32_0 = arith.constant 0 : i32
    %c0_i32_1 = arith.constant 0 : i32
    return %arg0, %c0_i32, %c0_i32_0 : i32, i32, i32
  }
}

</mosaic_0001>

<llo_original>
// kernel: conv_block_forward.1
$region0: #{conv_block_forward.1}
  #allocation0 [shape = 'u32[]', space=smem, size = 0x4, offset = 0x4, fixed_abs, tag = 'smem constant byte address 0x4 - core index']
  #allocation1 [shape = 'u32[144,128]{1,0:T(1,128)}', space=vmem, size = 0x12000, scoped, tag = 'internal scratch']
  #allocation2 [shape = 'f32[36,72]{1,0:T(8,128)}', space=vmem, size = 0x5000, scoped, tag = 'scratch operand']
  %s0 = inlined_call_operand.vmem [shape: f32[2,4,4,90], index: 0, kind: input, shape index: {}]
  %s1 = inlined_call_operand.vmem [shape: f32[8,36], index: 1, kind: input, shape index: {}]
  %s2 = inlined_call_operand.vmem [shape: f32[8,1], index: 2, kind: input, shape index: {}]
  %s3 = inlined_call_operand.vmem [shape: f32[2,8,72], index: 3, kind: output, shape index: {}]
  %s4 = sld [smem:[#allocation0]]
  $region45: #{conv_block_forward.1} parent=0
    _
  %s6 = ssub.s32 1, %s4
  %s7 = scalar_select 0, %s6, %s4
  loop: start=0, step=1, limit=4
  $region2: #{conv_block_forward.1} parent=0 // loop_pre_header
    _
  $region3: #{conv_block_forward.1} parent=0 // loop_header
    %s9 = sphi 0, %s13
    %p10 = scmp.ge.s32.totalorder %s9, 4
    %s19 = sphi 0, %s21
    %s22 = sphi 0, %s19
    %s23 = sphi 0, %s22
    %s39 = sphi 0, %s23
    %s43 = sphi 0, %s43
    %s45 = sphi 0, %s43
    %s46 = sphi 0, %s45
    %s60 = sphi 0, %s46
    %s64 = sphi 0, %s64
    %s66 = sphi 0, %s64
    %s67 = sphi 0, %s66
    %s81 = sphi 0, %s67
    %s87 = sphi 0, %s89
    %s90 = sphi 0, %s87
    %s91 = sphi 0, %s90
    %s107 = sphi 0, %s91
  $region4: #{conv_block_forward.1} parent=0 // loop_header_branch
    %12 = sbr.rel (%p10) target = $region8
  $region5: #{conv_block_forward.1} parent=0 // loop_body
    %s14 = ssub.s32 %s9, 1
    %s15 = ssub.s32 %s9, 2
    %s16 = sadd.s32 %s9, 1
    %s17 = ssub.s32 %s9, %s16
    %p18 = scmp.eq.s32.totalorder %s17, 0
    %s20 = sadd.s32 %s19, 1
    %s21 = scalar_select %p18, %s19, %s20
    %p24 = pneg %p18
    %p25 = scmp.eq.s32.totalorder %s9, 1
    %p26 = por %p24, %p25
    %p27 = scmp.ne.s32.totalorder %s19, %s22
    %p28 = scmp.eq.s32.totalorder %s9, 0
    %p29 = por %p27, %p28
    %p30 = scmp.ne.s32.totalorder %s19, %s22
    %p31 = scmp.eq.s32.totalorder %s14, 1
    %p32 = por %p30, %p31
    %p33 = scmp.ne.s32.totalorder %s22, %s23
    %p34 = scmp.eq.s32.totalorder %s14, 0
    %p35 = por %p33, %p34
    %p36 = scmp.ne.s32.totalorder %s22, %s23
    %p37 = scmp.eq.s32.totalorder %s15, 1
    %p38 = por %p36, %p37
    %p40 = scmp.ne.s32.totalorder %s23, %s39
    %p41 = scmp.eq.s32.totalorder %s15, 0
    %p42 = por %p40, %p41
    %s44 = sadd.s32 %s43, 1
    %p47 = scmp.eq.s32.totalorder %s9, 1
    %p48 = scmp.ne.s32.totalorder %s43, %s45
    %p49 = scmp.eq.s32.totalorder %s9, 0
    %p50 = por %p48, %p49
    %p51 = scmp.ne.s32.totalorder %s43, %s45
    %p52 = scmp.eq.s32.totalorder %s14, 1
    %p53 = por %p51, %p52
    %p54 = scmp.ne.s32.totalorder %s45, %s46
    %p55 = scmp.eq.s32.totalorder %s14, 0
    %p56 = por %p54, %p55
    %p57 = scmp.ne.s32.totalorder %s45, %s46
    %p58 = scmp.eq.s32.totalorder %s15, 1
    %p59 = por %p57, %p58
    %p61 = scmp.ne.s32.totalorder %s46, %s60
    %p62 = scmp.eq.s32.totalorder %s15, 0
    %p63 = por %p61, %p62
    %s65 = sadd.s32 %s64, 1
    %p68 = scmp.eq.s32.totalorder %s9, 1
    %p69 = scmp.ne.s32.totalorder %s64, %s66
    %p70 = scmp.eq.s32.totalorder %s9, 0
    %p71 = por %p69, %p70
    %p72 = scmp.ne.s32.totalorder %s64, %s66
    %p73 = scmp.eq.s32.totalorder %s14, 1
    %p74 = por %p72, %p73
    %p75 = scmp.ne.s32.totalorder %s66, %s67
    %p76 = scmp.eq.s32.totalorder %s14, 0
    %p77 = por %p75, %p76
    %p78 = scmp.ne.s32.totalorder %s66, %s67
    %p79 = scmp.eq.s32.totalorder %s15, 1
    %p80 = por %p78, %p79
    %p82 = scmp.ne.s32.totalorder %s67, %s81
    %p83 = scmp.eq.s32.totalorder %s15, 0
    %p84 = por %p82, %p83
    %s85 = ssub.s32 %s9, %s16
    %p86 = scmp.eq.s32.totalorder %s85, 0
    %s88 = sadd.s32 %s87, 1
    %s89 = scalar_select %p86, %s87, %s88
    %p92 = pneg %p86
    %p93 = scmp.eq.s32.totalorder %s9, 1
    %p94 = por %p92, %p93
    %p95 = scmp.ne.s32.totalorder %s87, %s90
    %p96 = scmp.eq.s32.totalorder %s9, 0
    %p97 = por %p95, %p96
    %p98 = scmp.ne.s32.totalorder %s87, %s90
    %p99 = scmp.eq.s32.totalorder %s14, 1
    %p100 = por %p98, %p99
    %p101 = scmp.ne.s32.totalorder %s90, %s91
    %p102 = scmp.eq.s32.totalorder %s14, 0
    %p103 = por %p101, %p102
    %p104 = scmp.ne.s32.totalorder %s90, %s91
    %p105 = scmp.eq.s32.totalorder %s15, 1
    %p106 = por %p104, %p105
    %p108 = scmp.ne.s32.totalorder %s91, %s107
    %p109 = scmp.eq.s32.totalorder %s15, 0
    %p110 = por %p108, %p109
    %p111 = scmp.le.s32.totalorder 1, %s9
    %p112 = scmp.lt.s32.totalorder %s9, 3
    %p113 = pnand %p111, %p112
    %p114 = pneg %p113
    // Predicated region
    $region9: #{conv_block_forward.1} parent=5 // pred_check
      _
    $region10: #{conv_block_forward.1} parent=5 // pred_check_branch
      %116 = sbr.rel (%p113) target = $region12
    $region11: #{conv_block_forward.1} parent=5 // pred_region
      %s117 = ssub.s32 %s9, 1
      // Predicated region
      $region13: #{conv_block_forward.1} parent=11 // pred_check
        %p118 = pneg %p56
      $region14: #{conv_block_forward.1} parent=11 // pred_check_branch
        %120 = sbr.rel (%p118) target = $region16
      $region15: #{conv_block_forward.1} parent=11 // pred_region
        _
      $region16: #{conv_block_forward.1} parent=11 // pred_fallthru
        _
      // Predicated region
      $region17: #{conv_block_forward.1} parent=11 // pred_check
        %p121 = pneg %p77
      $region18: #{conv_block_forward.1} parent=11 // pred_check_branch
        %123 = sbr.rel (%p121) target = $region20
      $region19: #{conv_block_forward.1} parent=11 // pred_region
        _
      $region20: #{conv_block_forward.1} parent=11 // pred_fallthru
        _
    $region12: #{conv_block_forward.1} parent=5 // pred_fallthru
      _
    %p124 = scmp.lt.s32.totalorder %s9, 2
    // Predicated region
    $region21: #{conv_block_forward.1} parent=5 // pred_check
      %p125 = pneg %p124
    $region22: #{conv_block_forward.1} parent=5 // pred_check_branch
      %127 = sbr.rel (%p125) target = $region24
    $region23: #{conv_block_forward.1} parent=5 // pred_region
      // Predicated region
      $region25: #{conv_block_forward.1} parent=23 // pred_check
        %p128 = pneg %p29
      $region26: #{conv_block_forward.1} parent=23 // pred_check_branch
        %130 = sbr.rel (%p128) target = $region28
      $region27: #{conv_block_forward.1} parent=23 // pred_region
        %p131 = scmp.lt.s32.totalorder %s9, 1
        %s132 = scalar_select %p131, %s9, 1
        %s133 = smul.addr %s132, 4
        %s134 = smul.addr %s133, 4
        %s135 = scalar_lea.vmem %s0, %s134
      $region28: #{conv_block_forward.1} parent=23 // pred_fallthru
        _
    $region24: #{conv_block_forward.1} parent=5 // pred_fallthru
      _
    %p136 = scmp.le.s32.totalorder 1, %s9
    %p137 = scmp.lt.s32.totalorder %s9, 3
    %p138 = pnand %p136, %p137
    %p139 = pneg %p138
    // Predicated region
    $region29: #{conv_block_forward.1} parent=5 // pred_check
      _
    $region30: #{conv_block_forward.1} parent=5 // pred_check_branch
      %141 = sbr.rel (%p138) target = $region32
    $region31: #{conv_block_forward.1} parent=5 // pred_region
      %s142 = ssub.s32 %s9, 1
      %p143 = scmp.lt.s32.totalorder %s14, 1
      %s144 = scalar_select %p143, %s14, 1
      %s145 = smul.addr %s144, 4
      %s146 = smul.addr %s145, 4
      %s147 = scalar_lea.vmem %s0, %s146
      %p148 = pneg %p35
      %p149 = pneg %p32
      %p150 = pneg %p56
      %p151 = pneg %p53
      %p152 = pneg %p77
      %p153 = pneg %p74
      %p154 = pneg %p103
      %p155 = pneg %p100
      %p156 = scmp.lt.s32.totalorder %s14, 1
      %s157 = scalar_select %p156, %s14, 1
      %s158 = smul.addr %s157, 8
      %s159 = scalar_lea.vmem %s3, %s158
      %p160 = scmp.lt.s32.totalorder %s14, 1
      %s161 = scalar_select %p160, %s14, 1
      %s162 = smul.addr %s161, 4
      %s163 = smul.addr %s162, 4
      %s164 = scalar_lea.vmem %s0, %s163
      %p165 = scmp.lt.s32.totalorder %s14, 1
      %s166 = scalar_select %p165, %s14, 1
      %s167 = smul.addr %s166, 8
      %s168 = scalar_lea.vmem %s3, %s167
      %v169 = vld [vmem:[%s164] sm:$0xf]
      %vm170 = vcmask 584704
      %171 = vst.msk [vmem:[#allocation2] sm:$0xf] %vm170, %v169
      %s172 = scalar_lea.vmem %s164, 4
      %v173 = vld [vmem:[%s172] sm:$0xf]
      %174 = vst.msk [vmem:[#allocation2 + $0x4] sm:$0xf] %vm170, %v173
      %v175 = vld [vmem:[%s164] sm:$0xf]
      %177 = vrot.lane.b32.xlu0 %v175, 127
      %v178 = vpop.permute.xlu0 %177
      %180 = vst.msk [vmem:[#allocation2 + $0x8] sm:$0xf] %vm170, %v178
      %s181 = scalar_lea.vmem %s164, 8
      %v182 = vld [vmem:[%s181] sm:$0xf]
      %183 = vst.msk [vmem:[#allocation2 + $0xc] sm:$0xf] %vm170, %v182
      %s184 = scalar_lea.vmem %s164, 12
      %v185 = vld [vmem:[%s184] sm:$0xf]
      %186 = vst.msk [vmem:[#allocation2 + $0x10] sm:$0xf] %vm170, %v185
      %v187 = vld [vmem:[%s181] sm:$0xf]
      %189 = vrot.lane.b32.xlu0 %v187, 127
      %v190 = vpop.permute.xlu0 %189
      %192 = vst.msk [vmem:[#allocation2 + $0x14] sm:$0xf] %vm170, %v190
      %v193 = vld [vmem:[%s164] sm:$0xf]
      %195 = vrot.lane.b32.xlu0 %v193, 119
      %v196 = vpop.permute.xlu0 %195
      %198 = vst.msk [vmem:[#allocation2 + $0x18] sm:$0xf] %vm170, %v196
      %v199 = vld [vmem:[%s172] sm:$0xf]
      %201 = vrot.lane.b32.xlu0 %v199, 119
      %v202 = vpop.permute.xlu0 %201
      %204 = vst.msk [vmem:[#allocation2 + $0x1c] sm:$0xf] %vm170, %v202
      %v205 = vld [vmem:[%s164] sm:$0xf]
      %207 = vrot.lane.b32.xlu0 %v205, 118
      %v208 = vpop.permute.xlu0 %207
      %210 = vst.msk [vmem:[#allocation2 + $0x20] sm:$0xf] %vm170, %v208
      %v211 = vld [vmem:[%s1] sm:$0xff]
      %v212 = vld [vmem:[#allocation2] sm:$0xff]
      %v213 = vld [vmem:[#allocation2 + $0x8] sm:$0xff]
      %v214 = vld [vmem:[#allocation2 + $0x10] sm:$0xff]
      %v215 = vld [vmem:[#allocation2 + $0x18] sm:$0xff]
      %v216 = vld [vmem:[#allocation2 + $0x20] sm:$0xf]
      %v217 = vld [vmem:[%s2] sm:$0xff]
      %219 = vset.pattern.permute.xlu0 0
      %220 = vperm.xlu0 %219, %v217
      %v221 = vpop.permute.xlu0 %220
      %vm223 = vcmask 293888
      %v225 = vsel %vm223, %v211, 0
      %vm227 = vcmask 1043456
      %v229 = vsel %vm227, %v216, 0
      %231 = vmatprep.subr.mxu0 0.0
      %232 = vmatpush1.msra.mxu0 %v212
      %233 = vmatprep.subr.mxu0 0.0
      %234 = vmatpush1.msra.mxu0 %v213
      %235 = vmatprep.subr.mxu0 0.0
      %236 = vmatpush1.msra.mxu0 %v214
      %237 = vmatprep.subr.mxu0 0.0
      %238 = vmatpush1.msra.mxu0 %v215
      %239 = vmatprep.subr.mxu0 0.0
      %240 = vmatpush1.msra.mxu0 %v229
      %241 = vmatprep.subr.mxu0 0.0
      %242 = vmatpush1.msra.mxu0 0.0
      %243 = vmatprep.subr.mxu0 0.0
      %244 = vmatpush1.msra.mxu0 0.0
      %245 = vmatprep.subr.mxu0 0.0
      %246 = vmatpush1.msra.mxu0 0.0
      %247 = vmatprep.subr.mxu0 0.0
      %248 = vmatpush1.msra.mxu0 0.0
      %249 = vmatprep.subr.mxu0 0.0
      %250 = vmatpush1.msra.mxu0 0.0
      %251 = vmatprep.subr.mxu0 0.0
      %252 = vmatpush1.msra.mxu0 0.0
      %253 = vmatprep.subr.mxu0 0.0
      %254 = vmatpush1.msra.mxu0 0.0
      %255 = vmatprep.subr.mxu0 0.0
      %256 = vmatpush1.msra.mxu0 0.0
      %257 = vmatprep.subr.mxu0 0.0
      %258 = vmatpush1.msra.mxu0 0.0
      %259 = vmatprep.subr.mxu0 0.0
      %260 = vmatpush1.msra.mxu0 0.0
      %261 = vmatprep.subr.mxu0 0.0
      %262 = vmatpush1.msra.mxu0 0.0
      %263 = vmatprep.subr.mxu0 0.0
      %264 = vmatpush1.msra.mxu0 0.0
      %265 = vmatprep.subr.mxu0 0.0
      %266 = vmatpush1.msra.mxu0 0.0
      %267 = vmatprep.subr.mxu0 0.0
      %268 = vmatpush1.msra.mxu0 0.0
      %269 = vmatprep.subr.mxu0 0.0
      %270 = vmatpush1.msra.mxu0 0.0
      %271 = vmatprep.subr.mxu0 0.0
      %272 = vmatpush1.msra.mxu0 0.0
      %273 = vmatprep.subr.mxu0 0.0
      %274 = vmatpush1.msra.mxu0 0.0
      %275 = vmatprep.subr.mxu0 0.0
      %276 = vmatpush1.msra.mxu0 0.0
      %277 = vmatprep.subr.mxu0 0.0
      %278 = vmatpush1.msra.mxu0 0.0
      %279 = vmatprep.subr.mxu0 0.0
      %280 = vmatpush1.msra.mxu0 0.0
      %281 = vmatprep.subr.mxu0 0.0
      %282 = vmatpush1.msra.mxu0 0.0
      %283 = vmatprep.subr.mxu0 0.0
      %284 = vmatpush1.msra.mxu0 0.0
      %285 = vmatprep.subr.mxu0 0.0
      %286 = vmatpush1.msra.mxu0 0.0
      %287 = vmatprep.subr.mxu0 0.0
      %288 = vmatpush1.msra.mxu0 0.0
      %289 = vmatprep.subr.mxu0 0.0
      %290 = vmatpush1.msra.mxu0 0.0
      %291 = vmatprep.subr.mxu0 0.0
      %292 = vmatpush1.msra.mxu0 0.0
      %293 = vmatprep.subr.mxu0 0.0
      %294 = vmatpush1.msra.mxu0 0.0
      %295 = vmatprep.mubr.f32.mxu0 0.0
      %296 = vmatmul.mubr.f32.gmra.mrb[0].mxu0 %v225
      %v297 = vpop.f32.mrb[0].mxu0
      %v298 = vadd.f32 %v221, %v297
      %v299 = vpop.f32.mrb[0].mxu0
      %300 = vdwg.mxu0
      %vm301 = vcmask 588800
      %302 = vst.msk [vmem:[%s168] sm:$0xff] %vm301, %v298
      %p303 = scmp.lt.s32.totalorder %s14, 1
      %s304 = scalar_select %p303, %s14, 1
      %s305 = smul.addr %s304, 8
      %s306 = scalar_lea.vmem %s3, %s305
      // Predicated region
      $region33: #{conv_block_forward.1} parent=31 // pred_check
        %p307 = pneg %p100
      $region34: #{conv_block_forward.1} parent=31 // pred_check_branch
        %309 = sbr.rel (%p307) target = $region36
      $region35: #{conv_block_forward.1} parent=31 // pred_region
        _
      $region36: #{conv_block_forward.1} parent=31 // pred_fallthru
        _
    $region32: #{conv_block_forward.1} parent=5 // pred_fallthru
      _
    %p310 = scmp.le.s32.totalorder 2, %s9
    // Predicated region
    $region37: #{conv_block_forward.1} parent=5 // pred_check
      %p311 = pneg %p310
    $region38: #{conv_block_forward.1} parent=5 // pred_check_branch
      %313 = sbr.rel (%p311) target = $region40
    $region39: #{conv_block_forward.1} parent=5 // pred_region
      %s314 = ssub.s32 %s9, 2
      // Predicated region
      $region41: #{conv_block_forward.1} parent=39 // pred_check
        %p315 = pneg %p106
      $region42: #{conv_block_forward.1} parent=39 // pred_check_branch
        %317 = sbr.rel (%p315) target = $region44
      $region43: #{conv_block_forward.1} parent=39 // pred_region
        %p318 = scmp.lt.s32.totalorder %s15, 1
        %s319 = scalar_select %p318, %s15, 1
        %s320 = smul.addr %s319, 8
        %s321 = scalar_lea.vmem %s3, %s320
      $region44: #{conv_block_forward.1} parent=39 // pred_fallthru
        _
    $region40: #{conv_block_forward.1} parent=5 // pred_fallthru
      _
  $region6: #{conv_block_forward.1} parent=0 // loop_footer
    %s13 = sadd.s32 1, %s9
  $region7: #{conv_block_forward.1} parent=0 // loop_footer_branch
    %8 = sbr.rel target = $region3
  $region8: #{conv_block_forward.1} parent=0 // loop_exit
    _

</llo_original>
